<compile_context>
chip_gen: v7x
topology: tpu7x:2x2x1
jax: 0.10.0
libtpu: 0.0.40
codegen_flags: <defaults>
</compile_context>

<pallas_src>
import jax
import jax.numpy as jnp
import numpy as np
from jax.experimental import pallas as pl
from jax.experimental.pallas import tpu as pltpu


def _score_topk_kernel(cls_ref, idx_ref):
    """Per image: softmax scores over classes (last class dropped) + top-K.

    cls_ref: (C, Q) f32 logits, queries on the lane axis.
    idx_ref: (1, K) int32 selected query indices, best-first.
    """
    C, Q = cls_ref.shape
    _, K = idx_ref.shape

    # Hoisted iotas (JAX does not CSE broadcast_in_dim inside loops).
    q_ids = jax.lax.broadcasted_iota(jnp.int32, (1, Q), 1)   # lane (query) ids
    c_ids = jax.lax.broadcasted_iota(jnp.int32, (C, 1), 0)   # class ids
    k_ids = jax.lax.broadcasted_iota(jnp.int32, (1, K), 1)   # output slot ids

    logits = cls_ref[...]                                    # (C, Q)

    # Numerically stable softmax scores with the division deferred past the
    # masked max (division by the positive row sum is monotone, so the max
    # commutes with it) -> one exact f32 divide per query instead of Q*C.
    m = jnp.max(logits, axis=0, keepdims=True)               # (1, Q)
    e = jnp.exp(logits - m)                                  # (C, Q)
    z = jnp.sum(e, axis=0, keepdims=True)                    # (1, Q)
    e_keep = jnp.where(c_ids < C - 1, e, 0.0)                # drop last class
    s = jnp.max(e_keep, axis=0, keepdims=True)               # (1, Q)
    scores0 = s / z                                          # (1, Q)
    # NOTE: z is a sublane-order reduction; the reference's lane-order sum can
    # differ in the last ulp, so near-exact score ties may in principle pick a
    # different query than lax.top_k.  Harmless for real-valued features.

    idx0 = jnp.zeros((1, K), jnp.int32)

    def body(k, carry):
        scores, idx_row = carry
        mval = jnp.max(scores, axis=1, keepdims=True)        # (1, 1) lane reduce
        # First-occurrence tie-break (matches lax.top_k ordering).
        cand = jnp.where(scores == mval, q_ids, Q)           # (1, Q)
        sel_idx = jnp.min(cand, axis=1, keepdims=True)       # (1, 1) int32
        sel_idx = jnp.minimum(sel_idx, Q - 1)                # NaN-safety clamp
        sel = q_ids == sel_idx                               # (1, Q), one lane
        idx_row = jnp.where(k_ids == k, sel_idx, idx_row)    # O(K) state update
        scores = jnp.where(sel, -jnp.inf, scores)
        return scores, idx_row

    # Serial selection is fine for small K (per the perf review).
    # TODO(synk): for DINO-scale K (~300) switch to the rank-based select
    # (QxQ compare matrix -> rank[q] -> indices where rank < K) to remove the
    # serial XLU-reduce chain.
    unroll = True if K <= 32 else 8
    _, idx_row = jax.lax.fori_loop(0, K, body, (scores0, idx0), unroll=unroll)
    idx_ref[...] = idx_row


def _gather_rows_kernel(idx_ref, reg_ref, out_ref):
    """Per image: copy the K selected query rows of reg into the output.

    idx_ref: (B, K) int32 scalar-prefetch operand (whole array, in SMEM).
    reg_ref: (Q, D) f32 features for the current image.
    out_ref: (K, D) f32 gathered rows.
    """
    b = pl.program_id(0)
    K, _ = out_ref.shape

    def copy_row(k, carry):
        q = idx_ref[b, k]                                    # SMEM scalar read
        out_ref[pl.ds(k, 1), :] = reg_ref[pl.ds(q, 1), :]    # lane-dense (1, D)
        return carry

    if K <= 32:
        for k in range(K):                                   # static, tiny
            copy_row(k, 0)
    else:
        jax.lax.fori_loop(0, K, copy_row, 0)


# Explicit scoped-VMEM budget: double-buffered per-step blocks are well under
# a MiB even at real DINO sizes, so 32 MiB leaves ample headroom on every
# generation (v5e default scoped limit is only 16 MiB; v7x physical is 64 MiB).
_VMEM_LIMIT = 32 * 1024 * 1024


def cached_dino_encoder(cls_score, reg, max_per_img):
    """cls_score: [B, Q, C] f32, reg: [B, Q, D] f32  ->  [B, K, D] f32."""
    B, Q, C = cls_score.shape
    _, _, D = reg.shape
    K = int(max_per_img)
    assert K <= Q, "max_per_img must not exceed the number of queries"

    # Queries on the lane axis for the class reductions in kernel 1.  cls is
    # the small tensor, so this one-off XLA transpose is cheap plumbing.
    # TODO(synk): fold the transpose into the kernel (in-kernel XLU transpose
    # of the (Q, C) tile) to save one HBM round trip of cls_score.
    cls_t = jnp.swapaxes(cls_score, 1, 2)                    # [B, C, Q]

    # ---- kernel 1: softmax scores + top-K indices, one image per grid step.
    idx = pl.pallas_call(
        _score_topk_kernel,
        out_shape=jax.ShapeDtypeStruct((B, 1, K), jnp.int32),
        grid=(B,),
        in_specs=[pl.BlockSpec((None, C, Q), lambda b: (b, 0, 0))],
        out_specs=pl.BlockSpec((None, 1, K), lambda b: (b, 0, 0)),
        compiler_params=pltpu.CompilerParams(
            dimension_semantics=("parallel",),
            vmem_limit_bytes=_VMEM_LIMIT),
        cost_estimate=pl.CostEstimate(
            flops=6 * B * Q * C + 4 * B * K * Q,
            transcendentals=B * Q * C,
            bytes_accessed=4 * B * (C * Q + K)),
    )(cls_t)
    idx = idx.reshape(B, K)

    # ---- kernel 2: gather the selected rows with K lane-dense row copies;
    # indices delivered via scalar prefetch (SMEM).
    out = pl.pallas_call(
        _gather_rows_kernel,
        out_shape=jax.ShapeDtypeStruct((B, K, D), reg.dtype),
        grid_spec=pltpu.PrefetchScalarGridSpec(
            num_scalar_prefetch=1,
            grid=(B,),
            in_specs=[pl.BlockSpec((None, Q, D), lambda b, idx_ref: (b, 0, 0))],
            out_specs=pl.BlockSpec((None, K, D), lambda b, idx_ref: (b, 0, 0)),
        ),
        compiler_params=pltpu.CompilerParams(
            dimension_semantics=("parallel",),
            vmem_limit_bytes=_VMEM_LIMIT),
        cost_estimate=pl.CostEstimate(
            flops=B * K * D,
            transcendentals=0,
            bytes_accessed=4 * B * (Q * D + K * D) + 4 * B * K),
    )(idx, reg)
    return out


def reference(cls_score, reg, max_per_img):
    probs = jax.nn.softmax(cls_score, axis=-1)[..., :-1]
    scores = probs.max(-1)                                   # [B, Q]
    _, idx = jax.lax.top_k(scores, max_per_img)              # [B, K]
    return jnp.take_along_axis(reg, idx[..., None], axis=1)  # [B, K, D]


if __name__ == "__main__":
    # Small shapes consistent with the module: D=256 (hardcoded expand in
    # forward), Q queries, C classes (last one dropped), K = max_per_img.
    B, Q, C, D, K = 2, 64, 8, 256, 8

    key = jax.random.PRNGKey(0)
    k1, k2 = jax.random.split(key)
    # Synthetic "cached detector features" standing in for the .pth files.
    cls_score = jax.random.normal(k1, (B, Q, C), dtype=jnp.float32)
    reg = jax.random.normal(k2, (B, Q, D), dtype=jnp.float32)

    out = cached_dino_encoder(cls_score, reg, K)
    out = jax.block_until_ready(out)

    ref = reference(cls_score, reg, K)
    assert out.shape == (B, K, D)
    np.testing.assert_allclose(np.asarray(out), np.asarray(ref),
                               rtol=1e-5, atol=1e-5)
    print("KERNEL_OK")
</pallas_src>

<mosaic_0001>
module attributes {stable_mosaic.version = 11 : i64} {
  func.func @_score_topk_kernel(%arg0: i32, %arg1: memref<1x8x64xf32, #tpu.memory_space<vmem>>, %arg2: memref<1x1x8xi32, #tpu.memory_space<vmem>>) attributes {dimension_semantics = [#tpu.dimension_semantics<parallel>], iteration_bounds = array<i64: 2>, scalar_prefetch = 0 : i64, scratch_operands = 0 : i64, tpu.core_type = #tpu.core_type<tc>, window_params = [{transform_indices = @transform_0, window_bounds = array<i64: 1, 8, 64>}, {transform_indices = @transform_1, window_bounds = array<i64: 1, 1, 8>}]} {
    %0 = tpu.iota {dimensions = array<i32: 1>} : vector<1x64xi32>
    %1 = tpu.iota {dimensions = array<i32: 0>} : vector<8x1xi32>
    %2 = tpu.iota {dimensions = array<i32: 1>} : vector<1x8xi32>
    %c0 = arith.constant 0 : index
    %c0_0 = arith.constant 0 : index
    %c0_1 = arith.constant 0 : index
    %3 = vector.load %arg1[%c0, %c0_0, %c0_1] : memref<1x8x64xf32, #tpu.memory_space<vmem>>, vector<1x8x64xf32>
    %4 = vector.shape_cast %3 : vector<1x8x64xf32> to vector<8x64xf32>
    %cst = arith.constant dense<0xFF800000> : vector<64xf32>
    %5 = vector.multi_reduction <maximumf>, %4, %cst [0] : vector<8x64xf32> to vector<64xf32>
    %6 = vector.shape_cast %5 : vector<64xf32> to vector<1x64xf32>
    %7 = vector.broadcast %6 : vector<1x64xf32> to vector<8x64xf32>
    %8 = arith.subf %4, %7 : vector<8x64xf32>
    %9 = math.exp %8 : vector<8x64xf32>
    %cst_2 = arith.constant dense<0.000000e+00> : vector<64xf32>
    %10 = vector.multi_reduction <add>, %9, %cst_2 [0] : vector<8x64xf32> to vector<64xf32>
    %11 = vector.shape_cast %10 : vector<64xf32> to vector<1x64xf32>
    %c7_i32 = arith.constant 7 : i32
    %12 = vector.broadcast %c7_i32 : i32 to vector<8x1xi32>
    %13 = arith.cmpi slt, %1, %12 : vector<8x1xi32>
    %cst_3 = arith.constant 0.000000e+00 : f32
    %14 = vector.shape_cast %13 : vector<8x1xi1> to vector<8x1xi1>
    %15 = vector.broadcast %14 : vector<8x1xi1> to vector<8x64xi1>
    %16 = vector.broadcast %cst_3 : f32 to vector<8x64xf32>
    %17 = arith.select %15, %9, %16 : vector<8x64xi1>, vector<8x64xf32>
    %cst_4 = arith.constant dense<0xFF800000> : vector<64xf32>
    %18 = vector.multi_reduction <maximumf>, %17, %cst_4 [0] : vector<8x64xf32> to vector<64xf32>
    %19 = vector.shape_cast %18 : vector<64xf32> to vector<1x64xf32>
    %20 = arith.divf %19, %11 : vector<1x64xf32>
    %c0_i32 = arith.constant 0 : i32
    %21 = vector.broadcast %c0_i32 : i32 to vector<1x8xi32>
    %c0_i32_5 = arith.constant 0 : i32
    %cst_6 = arith.constant dense<0xFF800000> : vector<1xf32>
    %22 = vector.multi_reduction <maximumf>, %20, %cst_6 [1] : vector<1x64xf32> to vector<1xf32>
    %23 = vector.shape_cast %22 : vector<1xf32> to vector<1x1xf32>
    %24 = vector.broadcast %23 : vector<1x1xf32> to vector<1x64xf32>
    %25 = arith.cmpf oeq, %20, %24 : vector<1x64xf32>
    %c64_i32 = arith.constant 64 : i32
    %26 = vector.broadcast %c64_i32 : i32 to vector<1x64xi32>
    %27 = arith.select %25, %0, %26 : vector<1x64xi1>, vector<1x64xi32>
    %cst_7 = arith.constant dense<2147483647> : vector<1xi32>
    %28 = vector.multi_reduction <minsi>, %27, %cst_7 [1] : vector<1x64xi32> to vector<1xi32>
    %29 = vector.shape_cast %28 : vector<1xi32> to vector<1x1xi32>
    %c63_i32 = arith.constant 63 : i32
    %30 = vector.broadcast %c63_i32 : i32 to vector<1x1xi32>
    %31 = arith.minsi %29, %30 : vector<1x1xi32>
    %32 = vector.broadcast %31 : vector<1x1xi32> to vector<1x64xi32>
    %33 = arith.cmpi eq, %0, %32 : vector<1x64xi32>
    %34 = vector.broadcast %c0_i32_5 : i32 to vector<1x8xi32>
    %35 = arith.cmpi eq, %2, %34 : vector<1x8xi32>
    %36 = vector.shape_cast %31 : vector<1x1xi32> to vector<1x1xi32>
    %37 = vector.broadcast %36 : vector<1x1xi32> to vector<1x8xi32>
    %38 = arith.select %35, %37, %21 : vector<1x8xi1>, vector<1x8xi32>
    %cst_8 = arith.constant 0xFF800000 : f32
    %39 = vector.broadcast %cst_8 : f32 to vector<1x64xf32>
    %40 = arith.select %33, %39, %20 : vector<1x64xi1>, vector<1x64xf32>
    %c1_i32 = arith.constant 1 : i32
    %cst_9 = arith.constant dense<0xFF800000> : vector<1xf32>
    %41 = vector.multi_reduction <maximumf>, %40, %cst_9 [1] : vector<1x64xf32> to vector<1xf32>
    %42 = vector.shape_cast %41 : vector<1xf32> to vector<1x1xf32>
    %43 = vector.broadcast %42 : vector<1x1xf32> to vector<1x64xf32>
    %44 = arith.cmpf oeq, %40, %43 : vector<1x64xf32>
    %c64_i32_10 = arith.constant 64 : i32
    %45 = vector.broadcast %c64_i32_10 : i32 to vector<1x64xi32>
    %46 = arith.select %44, %0, %45 : vector<1x64xi1>, vector<1x64xi32>
    %cst_11 = arith.constant dense<2147483647> : vector<1xi32>
    %47 = vector.multi_reduction <minsi>, %46, %cst_11 [1] : vector<1x64xi32> to vector<1xi32>
    %48 = vector.shape_cast %47 : vector<1xi32> to vector<1x1xi32>
    %c63_i32_12 = arith.constant 63 : i32
    %49 = vector.broadcast %c63_i32_12 : i32 to vector<1x1xi32>
    %50 = arith.minsi %48, %49 : vector<1x1xi32>
    %51 = vector.broadcast %50 : vector<1x1xi32> to vector<1x64xi32>
    %52 = arith.cmpi eq, %0, %51 : vector<1x64xi32>
    %53 = vector.broadcast %c1_i32 : i32 to vector<1x8xi32>
    %54 = arith.cmpi eq, %2, %53 : vector<1x8xi32>
    %55 = vector.shape_cast %50 : vector<1x1xi32> to vector<1x1xi32>
    %56 = vector.broadcast %55 : vector<1x1xi32> to vector<1x8xi32>
    %57 = arith.select %54, %56, %38 : vector<1x8xi1>, vector<1x8xi32>
    %cst_13 = arith.constant 0xFF800000 : f32
    %58 = vector.broadcast %cst_13 : f32 to vector<1x64xf32>
    %59 = arith.select %52, %58, %40 : vector<1x64xi1>, vector<1x64xf32>
    %c2_i32 = arith.constant 2 : i32
    %cst_14 = arith.constant dense<0xFF800000> : vector<1xf32>
    %60 = vector.multi_reduction <maximumf>, %59, %cst_14 [1] : vector<1x64xf32> to vector<1xf32>
    %61 = vector.shape_cast %60 : vector<1xf32> to vector<1x1xf32>
    %62 = vector.broadcast %61 : vector<1x1xf32> to vector<1x64xf32>
    %63 = arith.cmpf oeq, %59, %62 : vector<1x64xf32>
    %c64_i32_15 = arith.constant 64 : i32
    %64 = vector.broadcast %c64_i32_15 : i32 to vector<1x64xi32>
    %65 = arith.select %63, %0, %64 : vector<1x64xi1>, vector<1x64xi32>
    %cst_16 = arith.constant dense<2147483647> : vector<1xi32>
    %66 = vector.multi_reduction <minsi>, %65, %cst_16 [1] : vector<1x64xi32> to vector<1xi32>
    %67 = vector.shape_cast %66 : vector<1xi32> to vector<1x1xi32>
    %c63_i32_17 = arith.constant 63 : i32
    %68 = vector.broadcast %c63_i32_17 : i32 to vector<1x1xi32>
    %69 = arith.minsi %67, %68 : vector<1x1xi32>
    %70 = vector.broadcast %69 : vector<1x1xi32> to vector<1x64xi32>
    %71 = arith.cmpi eq, %0, %70 : vector<1x64xi32>
    %72 = vector.broadcast %c2_i32 : i32 to vector<1x8xi32>
    %73 = arith.cmpi eq, %2, %72 : vector<1x8xi32>
    %74 = vector.shape_cast %69 : vector<1x1xi32> to vector<1x1xi32>
    %75 = vector.broadcast %74 : vector<1x1xi32> to vector<1x8xi32>
    %76 = arith.select %73, %75, %57 : vector<1x8xi1>, vector<1x8xi32>
    %cst_18 = arith.constant 0xFF800000 : f32
    %77 = vector.broadcast %cst_18 : f32 to vector<1x64xf32>
    %78 = arith.select %71, %77, %59 : vector<1x64xi1>, vector<1x64xf32>
    %c3_i32 = arith.constant 3 : i32
    %cst_19 = arith.constant dense<0xFF800000> : vector<1xf32>
    %79 = vector.multi_reduction <maximumf>, %78, %cst_19 [1] : vector<1x64xf32> to vector<1xf32>
    %80 = vector.shape_cast %79 : vector<1xf32> to vector<1x1xf32>
    %81 = vector.broadcast %80 : vector<1x1xf32> to vector<1x64xf32>
    %82 = arith.cmpf oeq, %78, %81 : vector<1x64xf32>
    %c64_i32_20 = arith.constant 64 : i32
    %83 = vector.broadcast %c64_i32_20 : i32 to vector<1x64xi32>
    %84 = arith.select %82, %0, %83 : vector<1x64xi1>, vector<1x64xi32>
    %cst_21 = arith.constant dense<2147483647> : vector<1xi32>
    %85 = vector.multi_reduction <minsi>, %84, %cst_21 [1] : vector<1x64xi32> to vector<1xi32>
    %86 = vector.shape_cast %85 : vector<1xi32> to vector<1x1xi32>
    %c63_i32_22 = arith.constant 63 : i32
    %87 = vector.broadcast %c63_i32_22 : i32 to vector<1x1xi32>
    %88 = arith.minsi %86, %87 : vector<1x1xi32>
    %89 = vector.broadcast %88 : vector<1x1xi32> to vector<1x64xi32>
    %90 = arith.cmpi eq, %0, %89 : vector<1x64xi32>
    %91 = vector.broadcast %c3_i32 : i32 to vector<1x8xi32>
    %92 = arith.cmpi eq, %2, %91 : vector<1x8xi32>
    %93 = vector.shape_cast %88 : vector<1x1xi32> to vector<1x1xi32>
    %94 = vector.broadcast %93 : vector<1x1xi32> to vector<1x8xi32>
    %95 = arith.select %92, %94, %76 : vector<1x8xi1>, vector<1x8xi32>
    %cst_23 = arith.constant 0xFF800000 : f32
    %96 = vector.broadcast %cst_23 : f32 to vector<1x64xf32>
    %97 = arith.select %90, %96, %78 : vector<1x64xi1>, vector<1x64xf32>
    %c4_i32 = arith.constant 4 : i32
    %cst_24 = arith.constant dense<0xFF800000> : vector<1xf32>
    %98 = vector.multi_reduction <maximumf>, %97, %cst_24 [1] : vector<1x64xf32> to vector<1xf32>
    %99 = vector.shape_cast %98 : vector<1xf32> to vector<1x1xf32>
    %100 = vector.broadcast %99 : vector<1x1xf32> to vector<1x64xf32>
    %101 = arith.cmpf oeq, %97, %100 : vector<1x64xf32>
    %c64_i32_25 = arith.constant 64 : i32
    %102 = vector.broadcast %c64_i32_25 : i32 to vector<1x64xi32>
    %103 = arith.select %101, %0, %102 : vector<1x64xi1>, vector<1x64xi32>
    %cst_26 = arith.constant dense<2147483647> : vector<1xi32>
    %104 = vector.multi_reduction <minsi>, %103, %cst_26 [1] : vector<1x64xi32> to vector<1xi32>
    %105 = vector.shape_cast %104 : vector<1xi32> to vector<1x1xi32>
    %c63_i32_27 = arith.constant 63 : i32
    %106 = vector.broadcast %c63_i32_27 : i32 to vector<1x1xi32>
    %107 = arith.minsi %105, %106 : vector<1x1xi32>
    %108 = vector.broadcast %107 : vector<1x1xi32> to vector<1x64xi32>
    %109 = arith.cmpi eq, %0, %108 : vector<1x64xi32>
    %110 = vector.broadcast %c4_i32 : i32 to vector<1x8xi32>
    %111 = arith.cmpi eq, %2, %110 : vector<1x8xi32>
    %112 = vector.shape_cast %107 : vector<1x1xi32> to vector<1x1xi32>
    %113 = vector.broadcast %112 : vector<1x1xi32> to vector<1x8xi32>
    %114 = arith.select %111, %113, %95 : vector<1x8xi1>, vector<1x8xi32>
    %cst_28 = arith.constant 0xFF800000 : f32
    %115 = vector.broadcast %cst_28 : f32 to vector<1x64xf32>
    %116 = arith.select %109, %115, %97 : vector<1x64xi1>, vector<1x64xf32>
    %c5_i32 = arith.constant 5 : i32
    %cst_29 = arith.constant dense<0xFF800000> : vector<1xf32>
    %117 = vector.multi_reduction <maximumf>, %116, %cst_29 [1] : vector<1x64xf32> to vector<1xf32>
    %118 = vector.shape_cast %117 : vector<1xf32> to vector<1x1xf32>
    %119 = vector.broadcast %118 : vector<1x1xf32> to vector<1x64xf32>
    %120 = arith.cmpf oeq, %116, %119 : vector<1x64xf32>
    %c64_i32_30 = arith.constant 64 : i32
    %121 = vector.broadcast %c64_i32_30 : i32 to vector<1x64xi32>
    %122 = arith.select %120, %0, %121 : vector<1x64xi1>, vector<1x64xi32>
    %cst_31 = arith.constant dense<2147483647> : vector<1xi32>
    %123 = vector.multi_reduction <minsi>, %122, %cst_31 [1] : vector<1x64xi32> to vector<1xi32>
    %124 = vector.shape_cast %123 : vector<1xi32> to vector<1x1xi32>
    %c63_i32_32 = arith.constant 63 : i32
    %125 = vector.broadcast %c63_i32_32 : i32 to vector<1x1xi32>
    %126 = arith.minsi %124, %125 : vector<1x1xi32>
    %127 = vector.broadcast %126 : vector<1x1xi32> to vector<1x64xi32>
    %128 = arith.cmpi eq, %0, %127 : vector<1x64xi32>
    %129 = vector.broadcast %c5_i32 : i32 to vector<1x8xi32>
    %130 = arith.cmpi eq, %2, %129 : vector<1x8xi32>
    %131 = vector.shape_cast %126 : vector<1x1xi32> to vector<1x1xi32>
    %132 = vector.broadcast %131 : vector<1x1xi32> to vector<1x8xi32>
    %133 = arith.select %130, %132, %114 : vector<1x8xi1>, vector<1x8xi32>
    %cst_33 = arith.constant 0xFF800000 : f32
    %134 = vector.broadcast %cst_33 : f32 to vector<1x64xf32>
    %135 = arith.select %128, %134, %116 : vector<1x64xi1>, vector<1x64xf32>
    %c6_i32 = arith.constant 6 : i32
    %cst_34 = arith.constant dense<0xFF800000> : vector<1xf32>
    %136 = vector.multi_reduction <maximumf>, %135, %cst_34 [1] : vector<1x64xf32> to vector<1xf32>
    %137 = vector.shape_cast %136 : vector<1xf32> to vector<1x1xf32>
    %138 = vector.broadcast %137 : vector<1x1xf32> to vector<1x64xf32>
    %139 = arith.cmpf oeq, %135, %138 : vector<1x64xf32>
    %c64_i32_35 = arith.constant 64 : i32
    %140 = vector.broadcast %c64_i32_35 : i32 to vector<1x64xi32>
    %141 = arith.select %139, %0, %140 : vector<1x64xi1>, vector<1x64xi32>
    %cst_36 = arith.constant dense<2147483647> : vector<1xi32>
    %142 = vector.multi_reduction <minsi>, %141, %cst_36 [1] : vector<1x64xi32> to vector<1xi32>
    %143 = vector.shape_cast %142 : vector<1xi32> to vector<1x1xi32>
    %c63_i32_37 = arith.constant 63 : i32
    %144 = vector.broadcast %c63_i32_37 : i32 to vector<1x1xi32>
    %145 = arith.minsi %143, %144 : vector<1x1xi32>
    %146 = vector.broadcast %145 : vector<1x1xi32> to vector<1x64xi32>
    %147 = arith.cmpi eq, %0, %146 : vector<1x64xi32>
    %148 = vector.broadcast %c6_i32 : i32 to vector<1x8xi32>
    %149 = arith.cmpi eq, %2, %148 : vector<1x8xi32>
    %150 = vector.shape_cast %145 : vector<1x1xi32> to vector<1x1xi32>
    %151 = vector.broadcast %150 : vector<1x1xi32> to vector<1x8xi32>
    %152 = arith.select %149, %151, %133 : vector<1x8xi1>, vector<1x8xi32>
    %cst_38 = arith.constant 0xFF800000 : f32
    %153 = vector.broadcast %cst_38 : f32 to vector<1x64xf32>
    %154 = arith.select %147, %153, %135 : vector<1x64xi1>, vector<1x64xf32>
    %c7_i32_39 = arith.constant 7 : i32
    %cst_40 = arith.constant dense<0xFF800000> : vector<1xf32>
    %155 = vector.multi_reduction <maximumf>, %154, %cst_40 [1] : vector<1x64xf32> to vector<1xf32>
    %156 = vector.shape_cast %155 : vector<1xf32> to vector<1x1xf32>
    %157 = vector.broadcast %156 : vector<1x1xf32> to vector<1x64xf32>
    %158 = arith.cmpf oeq, %154, %157 : vector<1x64xf32>
    %c64_i32_41 = arith.constant 64 : i32
    %159 = vector.broadcast %c64_i32_41 : i32 to vector<1x64xi32>
    %160 = arith.select %158, %0, %159 : vector<1x64xi1>, vector<1x64xi32>
    %cst_42 = arith.constant dense<2147483647> : vector<1xi32>
    %161 = vector.multi_reduction <minsi>, %160, %cst_42 [1] : vector<1x64xi32> to vector<1xi32>
    %162 = vector.shape_cast %161 : vector<1xi32> to vector<1x1xi32>
    %c63_i32_43 = arith.constant 63 : i32
    %163 = vector.broadcast %c63_i32_43 : i32 to vector<1x1xi32>
    %164 = arith.minsi %162, %163 : vector<1x1xi32>
    %165 = vector.broadcast %164 : vector<1x1xi32> to vector<1x64xi32>
    %166 = arith.cmpi eq, %0, %165 : vector<1x64xi32>
    %167 = vector.broadcast %c7_i32_39 : i32 to vector<1x8xi32>
    %168 = arith.cmpi eq, %2, %167 : vector<1x8xi32>
    %169 = vector.shape_cast %164 : vector<1x1xi32> to vector<1x1xi32>
    %170 = vector.broadcast %169 : vector<1x1xi32> to vector<1x8xi32>
    %171 = arith.select %168, %170, %152 : vector<1x8xi1>, vector<1x8xi32>
    %cst_44 = arith.constant 0xFF800000 : f32
    %172 = vector.broadcast %cst_44 : f32 to vector<1x64xf32>
    %173 = arith.select %166, %172, %154 : vector<1x64xi1>, vector<1x64xf32>
    %c8_i32 = arith.constant 8 : i32
    %c0_45 = arith.constant 0 : index
    %c0_46 = arith.constant 0 : index
    %c0_47 = arith.constant 0 : index
    %174 = vector.load %arg2[%c0_45, %c0_46, %c0_47] : memref<1x1x8xi32, #tpu.memory_space<vmem>>, vector<1x1x8xi32>
    %175 = vector.shape_cast %174 : vector<1x1x8xi32> to vector<1x8xi32>
    %176 = vector.shape_cast %171 : vector<1x8xi32> to vector<1x1x8xi32>
    tpu.vector_store %arg2[%c0_45, %c0_46, %c0_47], %176 {strides = array<i32>} : memref<1x1x8xi32, #tpu.memory_space<vmem>>, vector<1x1x8xi32>,
    return
  }
  func.func @transform_0(%arg0: i32) -> (i32, i32, i32) {
    %c0_i32 = arith.constant 0 : i32
    %c0_i32_0 = arith.constant 0 : i32
    %c0_i32_1 = arith.constant 0 : i32
    return %arg0, %c0_i32, %c0_i32_0 : i32, i32, i32
  }
  func.func @transform_1(%arg0: i32) -> (i32, i32, i32) {
    %c0_i32 = arith.constant 0 : i32
    %c0_i32_0 = arith.constant 0 : i32
    %c0_i32_1 = arith.constant 0 : i32
    return %arg0, %c0_i32, %c0_i32_0 : i32, i32, i32
  }
}

</mosaic_0001>

<llo_original>
// kernel: tpu_custom_call.1
$region0: #{tpu_custom_call.1}
  #allocation0 [shape = 'u32[]', space=smem, size = 0x4, offset = 0x4, fixed_abs, tag = 'smem constant byte address 0x4 - core index']
  #allocation1 [shape = 'u32[144,128]{1,0:T(1,128)}', space=vmem, size = 0x12000, scoped, tag = 'internal scratch']
  %s0 = inlined_call_operand.hbm [shape: f32[2,8,64], index: 0, kind: input, shape index: {}]
  %s1 = inlined_call_operand.hbm [shape: s32[2,1,8], index: 1, kind: output, shape index: {}]
  %s2 = sld [smem:[#allocation0]]
  $region41: #{tpu_custom_call.1} parent=0
    _
  %s4 = ssub.s32 1, %s2
  %s5 = scalar_select 0, %s4, %s2
  $region1: #{tpu_custom_call.1} parent=0
    #allocation2 [shape = 'u8[8192]{0}', space=vmem, size = 0x2000, scoped, tag = 'input window, operand 0']
    #allocation3 [shape = 's32[2]{0}', space=sflag, size = 0x8, scoped, tag = 'scoped memory for tpu_custom_call.1']
    #allocation4 [shape = 's32[2]{0}', space=sflag, size = 0x8, scoped, tag = 'scoped memory for tpu_custom_call.1']
    #allocation5 [shape = 'u8[1024]{0}', space=vmem, size = 0x400, scoped, tag = 'output window, operand 0']
    %6 = vsyncpa [#allocation3], 0
    %s7 = scalar_lea.sflag [#allocation3], 1
    %8 = vsyncpa %s7, 0
    %9 = vsyncpa [#allocation4], 0
    %s10 = scalar_lea.sflag [#allocation4], 1
    %11 = vsyncpa %s10, 0
    loop: start=0, step=1, limit=4
    $region2: #{tpu_custom_call.1} parent=1 // loop_pre_header
      _
    $region3: #{tpu_custom_call.1} parent=1 // loop_header
      %s13 = sphi 0, %s17
      %p14 = scmp.ge.s32.totalorder %s13, 4
      %s23 = sphi 0, %s25
      %s26 = sphi 0, %s23
      %s27 = sphi 0, %s26
      %s43 = sphi 0, %s27
      %s49 = sphi 0, %s51
      %s52 = sphi 0, %s49
      %s53 = sphi 0, %s52
      %s69 = sphi 0, %s53
    $region4: #{tpu_custom_call.1} parent=1 // loop_header_branch
      %16 = sbr.rel (%p14) target = $region8
    $region5: #{tpu_custom_call.1} parent=1 // loop_body
      %s18 = ssub.s32 %s13, 1
      %s19 = ssub.s32 %s13, 2
      %s20 = sadd.s32 %s13, 1
      %s21 = ssub.s32 %s13, %s20
      %p22 = scmp.eq.s32.totalorder %s21, 0
      %s24 = sadd.s32 %s23, 1
      %s25 = scalar_select %p22, %s23, %s24
      %p28 = pneg %p22
      %p29 = scmp.eq.s32.totalorder %s13, 1
      %p30 = por %p28, %p29
      %p31 = scmp.ne.s32.totalorder %s23, %s26
      %p32 = scmp.eq.s32.totalorder %s13, 0
      %p33 = por %p31, %p32
      %p34 = scmp.ne.s32.totalorder %s23, %s26
      %p35 = scmp.eq.s32.totalorder %s18, 1
      %p36 = por %p34, %p35
      %p37 = scmp.ne.s32.totalorder %s26, %s27
      %p38 = scmp.eq.s32.totalorder %s18, 0
      %p39 = por %p37, %p38
      %p40 = scmp.ne.s32.totalorder %s26, %s27
      %p41 = scmp.eq.s32.totalorder %s19, 1
      %p42 = por %p40, %p41
      %p44 = scmp.ne.s32.totalorder %s27, %s43
      %p45 = scmp.eq.s32.totalorder %s19, 0
      %p46 = por %p44, %p45
      %s47 = ssub.s32 %s13, %s20
      %p48 = scmp.eq.s32.totalorder %s47, 0
      %s50 = sadd.s32 %s49, 1
      %s51 = scalar_select %p48, %s49, %s50
      %p54 = pneg %p48
      %p55 = scmp.eq.s32.totalorder %s13, 1
      %p56 = por %p54, %p55
      %p57 = scmp.ne.s32.totalorder %s49, %s52
      %p58 = scmp.eq.s32.totalorder %s13, 0
      %p59 = por %p57, %p58
      %p60 = scmp.ne.s32.totalorder %s49, %s52
      %p61 = scmp.eq.s32.totalorder %s18, 1
      %p62 = por %p60, %p61
      %p63 = scmp.ne.s32.totalorder %s52, %s53
      %p64 = scmp.eq.s32.totalorder %s18, 0
      %p65 = por %p63, %p64
      %p66 = scmp.ne.s32.totalorder %s52, %s53
      %p67 = scmp.eq.s32.totalorder %s19, 1
      %p68 = por %p66, %p67
      %p70 = scmp.ne.s32.totalorder %s53, %s69
      %p71 = scmp.eq.s32.totalorder %s19, 0
      %p72 = por %p70, %p71
      %p73 = scmp.le.s32.totalorder 1, %s13
      %p74 = scmp.lt.s32.totalorder %s13, 3
      %p75 = pnand %p73, %p74
      %p76 = pneg %p75
      // Predicated region
      $region9: #{tpu_custom_call.1} parent=5 // pred_check
        _
      $region10: #{tpu_custom_call.1} parent=5 // pred_check_branch
        %78 = sbr.rel (%p75) target = $region12
      $region11: #{tpu_custom_call.1} parent=5 // pred_region
        %s79 = ssub.s32 %s13, 1
      $region12: #{tpu_custom_call.1} parent=5 // pred_fallthru
        _
      %p80 = scmp.lt.s32.totalorder %s13, 2
      // Predicated region
      $region13: #{tpu_custom_call.1} parent=5 // pred_check
        %p81 = pneg %p80
      $region14: #{tpu_custom_call.1} parent=5 // pred_check_branch
        %83 = sbr.rel (%p81) target = $region16
      $region15: #{tpu_custom_call.1} parent=5 // pred_region
        // Predicated region
        $region17: #{tpu_custom_call.1} parent=15 // pred_check
          %p84 = pneg %p33
        $region18: #{tpu_custom_call.1} parent=15 // pred_check_branch
          %86 = sbr.rel (%p84) target = $region20
        $region19: #{tpu_custom_call.1} parent=15 // pred_region
          %s87 = sand.u32 %s23, 1
          %s88 = scalar_lea.sflag [#allocation3], %s87
          %s89 = sand.u32 %s23, 1
          %s90 = smul.addr %s89, 8
          %s91 = scalar_lea.vmem [#allocation2], %s90
          %s93 = ssub.s32 128, 128
          %94 = vsyncadd %s88, %s93
          %s95 = smul.addr %s13, 128
          %s96 = scalar_lea.hbm %s0, %s95
          %s98 = sshll.u32 %s91, 4
          %s99 = int_to_ptr.vmem [resolvable:$true] %s98
          %101 = dma.hbm_to_vmem [thread:$0]  %s96, 128, %s99, %s88
        $region20: #{tpu_custom_call.1} parent=15 // pred_fallthru
          _
      $region16: #{tpu_custom_call.1} parent=5 // pred_fallthru
        _
      %p102 = scmp.le.s32.totalorder 1, %s13
      %p103 = scmp.lt.s32.totalorder %s13, 3
      %p104 = pnand %p102, %p103
      %p105 = pneg %p104
      // Predicated region
      $region21: #{tpu_custom_call.1} parent=5 // pred_check
        _
      $region22: #{tpu_custom_call.1} parent=5 // pred_check_branch
        %107 = sbr.rel (%p104) target = $region24
      $region23: #{tpu_custom_call.1} parent=5 // pred_region
        %s108 = ssub.s32 %s13, 1
        %s109 = sand.u32 %s26, 1
        %s110 = scalar_lea.sflag [#allocation3], %s109
        %s111 = sand.u32 %s26, 1
        %s112 = smul.addr %s111, 8
        %s113 = scalar_lea.vmem [#allocation2], %s112
        // Predicated region
        $region25: #{tpu_custom_call.1} parent=23 // pred_check
          %p114 = pneg %p39
        $region26: #{tpu_custom_call.1} parent=23 // pred_check_branch
          %116 = sbr.rel (%p114) target = $region28
        $region27: #{tpu_custom_call.1} parent=23 // pred_region
          %117 = dma.done %s110, 128
        $region28: #{tpu_custom_call.1} parent=23 // pred_fallthru
          _
        %s118 = sand.u32 %s26, 1
        %s119 = scalar_lea.sflag [#allocation3], %s118
        %s120 = sand.u32 %s26, 1
        %s121 = smul.addr %s120, 8
        %s122 = scalar_lea.vmem [#allocation2], %s121
        %p123 = pneg %p39
        %p124 = pneg %p36
        %p125 = pneg %p65
        %p126 = pneg %p62
        %s127 = sand.u32 %s52, 1
        %s128 = scalar_lea.sflag [#allocation4], %s127
        %s129 = sand.u32 %s52, 1
        %s130 = scalar_lea.vmem [#allocation5], %s129
        %v131 = vlaneseq
        %v132 = vand.u32 %v131, 127
        %v133 = vlaneseq
        %v134 = vshrl.u32 %v133, 7
        %v135 = vld [vmem:[%s113] sm:$0xff]
        %vm136 = vcmask 523264
        %v137 = vsel %vm136, %v135, -inf
        %v138 = vrot.slane %v137, 4
        %v139 = vmax.f32 %v137, %v138
        %v140 = vrot.slane %v139, 2
        %v141 = vmax.f32 %v139, %v140
        %v142 = vrot.slane %v141, 1
        %v143 = vmax.f32 %v141, %v142
        %v144 = vsub.f32 %v135, %v143
        %v145 = vmul.f32 %v144, 1.442695
        %v146 = vpow.pop %v145
        %v147 = vsel %vm136, %v146, 0.0
        %v148 = vrot.slane %v147, 4
        %v149 = vadd.f32 %v147, %v148
        %v150 = vrot.slane %v149, 2
        %v151 = vadd.f32 %v149, %v150
        %v152 = vrot.slane %v151, 1
        %v153 = vadd.f32 %v151, %v152
        %vm154 = vcmp.lt.s32.totalorder %v134, 7
        %v155 = vsel %vm154, 1, 0
        %vm156 = vcmp.eq.s32.totalorder %v155, 1
        %v157 = vsel %vm156, %v146, 0.0
        %v158 = vsel %vm136, %v157, -inf
        %v159 = vrot.slane %v158, 4
        %v160 = vmax.f32 %v158, %v159
        %v161 = vrot.slane %v160, 2
        %v162 = vmax.f32 %v160, %v161
        %v163 = vrot.slane %v162, 1
        %v164 = vmax.f32 %v162, %v163
        %v165 = vrcp.pop %v153
        %v166 = vmul.f32 %v164, %v165
        %v167 = vsel %vm136, %v166, -inf
        %168 = vmax.xlane.f32.xlu0 %v167
        %v169 = vpop.xlane.xlu0 %168
        %vm170 = vcmp.eq.f32.partialorder %v166, %v169
        %v171 = vsel %vm170, %v132, 64
        %v172 = vsel %vm136, %v171, 2147483647
        %v173 = vand.u32 %v172, 65535
        %v174 = vshra.s32 %v172, 16
        %v175 = vcvt.s32.f32 %v173
        %v176 = vcvt.s32.f32 %v174
        %177 = vmin.xlane.f32.xlu0 %v176
        %v178 = vpop.xlane.xlu0 %177
        %vm179 = vcmp.eq.f32.partialorder %v176, %v178
        %v180 = vsel %vm179, %v175, inf
        %181 = vmin.xlane.f32.xlu0 %v180
        %v182 = vpop.xlane.xlu0 %181
        %v183 = vcvt.f32.s32 %v182
        %v184 = vcvt.f32.s32 %v178
        %v185 = vshll.u32 %v184, 16
        %v186 = vadd.s32 %v185, %v183
        %vm187 = vcmp.lt.s32.totalorder %v186, 63
        %v188 = vsel %vm187, %v186, 63
        %vm189 = vcmp.eq.s32.totalorder %v132, %v188
        %vm190 = vcmp.eq.s32.totalorder %v132, 0
        %v191 = vsel %vm190, %v188, 0
        %v192 = vsel %vm189, -inf, %v166
        %v193 = vsel %vm136, %v192, -inf
        %194 = vmax.xlane.f32.xlu0 %v193
        %v195 = vpop.xlane.xlu0 %194
        %vm196 = vcmp.eq.f32.partialorder %v192, %v195
        %v197 = vsel %vm196, %v132, 64
        %v198 = vsel %vm136, %v197, 2147483647
        %v199 = vand.u32 %v198, 65535
        %v200 = vshra.s32 %v198, 16
        %v201 = vcvt.s32.f32 %v199
        %v202 = vcvt.s32.f32 %v200
        %203 = vmin.xlane.f32.xlu0 %v202
        %v204 = vpop.xlane.xlu0 %203
        %vm205 = vcmp.eq.f32.partialorder %v202, %v204
        %v206 = vsel %vm205, %v201, inf
        %207 = vmin.xlane.f32.xlu0 %v206
        %v208 = vpop.xlane.xlu0 %207
        %v209 = vcvt.f32.s32 %v208
        %v210 = vcvt.f32.s32 %v204
        %v211 = vshll.u32 %v210, 16
        %v212 = vadd.s32 %v211, %v209
        %vm213 = vcmp.lt.s32.totalorder %v212, 63
        %v214 = vsel %vm213, %v212, 63
        %vm215 = vcmp.eq.s32.totalorder %v132, %v214
        %vm216 = vcmp.eq.s32.totalorder %v132, 1
        %v217 = vsel %vm216, %v214, %v191
        %v218 = vsel %vm215, -inf, %v192
        %v219 = vsel %vm136, %v218, -inf
        %220 = vmax.xlane.f32.xlu0 %v219
        %v221 = vpop.xlane.xlu0 %220
        %vm222 = vcmp.eq.f32.partialorder %v218, %v221
        %v223 = vsel %vm222, %v132, 64
        %v224 = vsel %vm136, %v223, 2147483647
        %v225 = vand.u32 %v224, 65535
        %v226 = vshra.s32 %v224, 16
        %v227 = vcvt.s32.f32 %v225
        %v228 = vcvt.s32.f32 %v226
        %229 = vmin.xlane.f32.xlu0 %v228
        %v230 = vpop.xlane.xlu0 %229
        %vm231 = vcmp.eq.f32.partialorder %v228, %v230
        %v232 = vsel %vm231, %v227, inf
        %233 = vmin.xlane.f32.xlu0 %v232
        %v234 = vpop.xlane.xlu0 %233
        %v235 = vcvt.f32.s32 %v234
        %v236 = vcvt.f32.s32 %v230
        %v237 = vshll.u32 %v236, 16
        %v238 = vadd.s32 %v237, %v235
        %vm239 = vcmp.lt.s32.totalorder %v238, 63
        %v240 = vsel %vm239, %v238, 63
        %vm241 = vcmp.eq.s32.totalorder %v132, %v240
        %vm242 = vcmp.eq.s32.totalorder %v132, 2
        %v243 = vsel %vm242, %v240, %v217
        %v244 = vsel %vm241, -inf, %v218
        %v245 = vsel %vm136, %v244, -inf
        %246 = vmax.xlane.f32.xlu0 %v245
        %v247 = vpop.xlane.xlu0 %246
        %vm248 = vcmp.eq.f32.partialorder %v244, %v247
        %v249 = vsel %vm248, %v132, 64
        %v250 = vsel %vm136, %v249, 2147483647
        %v251 = vand.u32 %v250, 65535
        %v252 = vshra.s32 %v250, 16
        %v253 = vcvt.s32.f32 %v251
        %v254 = vcvt.s32.f32 %v252
        %255 = vmin.xlane.f32.xlu0 %v254
        %v256 = vpop.xlane.xlu0 %255
        %vm257 = vcmp.eq.f32.partialorder %v254, %v256
        %v258 = vsel %vm257, %v253, inf
        %259 = vmin.xlane.f32.xlu0 %v258
        %v260 = vpop.xlane.xlu0 %259
        %v261 = vcvt.f32.s32 %v260
        %v262 = vcvt.f32.s32 %v256
        %v263 = vshll.u32 %v262, 16
        %v264 = vadd.s32 %v263, %v261
        %vm265 = vcmp.lt.s32.totalorder %v264, 63
        %v266 = vsel %vm265, %v264, 63
        %vm267 = vcmp.eq.s32.totalorder %v132, %v266
        %vm268 = vcmp.eq.s32.totalorder %v132, 3
        %v269 = vsel %vm268, %v266, %v243
        %v270 = vsel %vm267, -inf, %v244
        %v271 = vsel %vm136, %v270, -inf
        %272 = vmax.xlane.f32.xlu0 %v271
        %v273 = vpop.xlane.xlu0 %272
        %vm274 = vcmp.eq.f32.partialorder %v270, %v273
        %v275 = vsel %vm274, %v132, 64
        %v276 = vsel %vm136, %v275, 2147483647
        %v277 = vand.u32 %v276, 65535
        %v278 = vshra.s32 %v276, 16
        %v279 = vcvt.s32.f32 %v277
        %v280 = vcvt.s32.f32 %v278
        %281 = vmin.xlane.f32.xlu0 %v280
        %v282 = vpop.xlane.xlu0 %281
        %vm283 = vcmp.eq.f32.partialorder %v280, %v282
        %v284 = vsel %vm283, %v279, inf
        %285 = vmin.xlane.f32.xlu0 %v284
        %v286 = vpop.xlane.xlu0 %285
        %v287 = vcvt.f32.s32 %v286
        %v288 = vcvt.f32.s32 %v282
        %v289 = vshll.u32 %v288, 16
        %v290 = vadd.s32 %v289, %v287
        %vm291 = vcmp.lt.s32.totalorder %v290, 63
        %v292 = vsel %vm291, %v290, 63
        %vm293 = vcmp.eq.s32.totalorder %v132, %v292
        %vm294 = vcmp.eq.s32.totalorder %v132, 4
        %v295 = vsel %vm294, %v292, %v269
        %v296 = vsel %vm293, -inf, %v270
        %v297 = vsel %vm136, %v296, -inf
        %298 = vmax.xlane.f32.xlu0 %v297
        %v299 = vpop.xlane.xlu0 %298
        %vm300 = vcmp.eq.f32.partialorder %v296, %v299
        %v301 = vsel %vm300, %v132, 64
        %v302 = vsel %vm136, %v301, 2147483647
        %v303 = vand.u32 %v302, 65535
        %v304 = vshra.s32 %v302, 16
        %v305 = vcvt.s32.f32 %v303
        %v306 = vcvt.s32.f32 %v304
        %307 = vmin.xlane.f32.xlu0 %v306
        %v308 = vpop.xlane.xlu0 %307
        %vm309 = vcmp.eq.f32.partialorder %v306, %v308
        %v310 = vsel %vm309, %v305, inf
        %311 = vmin.xlane.f32.xlu0 %v310
        %v312 = vpop.xlane.xlu0 %311
        %v313 = vcvt.f32.s32 %v312
        %v314 = vcvt.f32.s32 %v308
        %v315 = vshll.u32 %v314, 16
        %v316 = vadd.s32 %v315, %v313
        %vm317 = vcmp.lt.s32.totalorder %v316, 63
        %v318 = vsel %vm317, %v316, 63
        %vm319 = vcmp.eq.s32.totalorder %v132, %v318
        %vm320 = vcmp.eq.s32.totalorder %v132, 5
        %v321 = vsel %vm320, %v318, %v295
        %v322 = vsel %vm319, -inf, %v296
        %v323 = vsel %vm136, %v322, -inf
        %324 = vmax.xlane.f32.xlu0 %v323
        %v325 = vpop.xlane.xlu0 %324
        %vm326 = vcmp.eq.f32.partialorder %v322, %v325
        %v327 = vsel %vm326, %v132, 64
        %v328 = vsel %vm136, %v327, 2147483647
        %v329 = vand.u32 %v328, 65535
        %v330 = vshra.s32 %v328, 16
        %v331 = vcvt.s32.f32 %v329
        %v332 = vcvt.s32.f32 %v330
        %333 = vmin.xlane.f32.xlu0 %v332
        %v334 = vpop.xlane.xlu0 %333
        %vm335 = vcmp.eq.f32.partialorder %v332, %v334
        %v336 = vsel %vm335, %v331, inf
        %337 = vmin.xlane.f32.xlu0 %v336
        %v338 = vpop.xlane.xlu0 %337
        %v339 = vcvt.f32.s32 %v338
        %v340 = vcvt.f32.s32 %v334
        %v341 = vshll.u32 %v340, 16
        %v342 = vadd.s32 %v341, %v339
        %vm343 = vcmp.lt.s32.totalorder %v342, 63
        %v344 = vsel %vm343, %v342, 63
        %vm345 = vcmp.eq.s32.totalorder %v132, %v344
        %vm346 = vcmp.eq.s32.totalorder %v132, 6
        %v347 = vsel %vm346, %v344, %v321
        %v348 = vsel %vm345, -inf, %v322
        %v349 = vsel %vm136, %v348, -inf
        %350 = vmax.xlane.f32.xlu0 %v349
        %v351 = vpop.xlane.xlu0 %350
        %vm352 = vcmp.eq.f32.partialorder %v348, %v351
        %v353 = vsel %vm352, %v132, 64
        %v354 = vsel %vm136, %v353, 2147483647
        %v355 = vand.u32 %v354, 65535
        %v356 = vshra.s32 %v354, 16
        %v357 = vcvt.s32.f32 %v355
        %v358 = vcvt.s32.f32 %v356
        %359 = vmin.xlane.f32.xlu0 %v358
        %v360 = vpop.xlane.xlu0 %359
        %vm361 = vcmp.eq.f32.partialorder %v358, %v360
        %v362 = vsel %vm361, %v357, inf
        %363 = vmin.xlane.f32.xlu0 %v362
        %v364 = vpop.xlane.xlu0 %363
        %v365 = vcvt.f32.s32 %v364
        %v366 = vcvt.f32.s32 %v360
        %v367 = vshll.u32 %v366, 16
        %v368 = vadd.s32 %v367, %v365
        %vm369 = vcmp.lt.s32.totalorder %v368, 63
        %v370 = vsel %vm369, %v368, 63
        %vm371 = vcmp.eq.s32.totalorder %v132, 7
        %v372 = vsel %vm371, %v370, %v347
        %vm373 = vcmask 57344
        %374 = vst.msk [vmem:[%s130] sm:$0x1] %vm373, %v372
        %s375 = sand.u32 %s52, 1
        %s376 = scalar_lea.sflag [#allocation4], %s375
        %s377 = sand.u32 %s52, 1
        %s378 = scalar_lea.vmem [#allocation5], %s377
        // Predicated region
        $region29: #{tpu_custom_call.1} parent=23 // pred_check
          %p379 = pneg %p62
        $region30: #{tpu_custom_call.1} parent=23 // pred_check_branch
          %381 = sbr.rel (%p379) target = $region32
        $region31: #{tpu_custom_call.1} parent=23 // pred_region
          %s383 = ssub.s32 16, 16
          %384 = vsyncadd %s376, %s383
          %s385 = smul.addr %s18, 16
          %s386 = scalar_lea.hbm %s1, %s385
          %s388 = sshll.u32 %s378, 4
          %s389 = int_to_ptr.vmem [resolvable:$true] %s388
          %391 = dma.vmem_to_hbm [thread:$0]  %s389, 16, %s386, %s376
        $region32: #{tpu_custom_call.1} parent=23 // pred_fallthru
          _
      $region24: #{tpu_custom_call.1} parent=5 // pred_fallthru
        _
      %p392 = scmp.le.s32.totalorder 2, %s13
      // Predicated region
      $region33: #{tpu_custom_call.1} parent=5 // pred_check
        %p393 = pneg %p392
      $region34: #{tpu_custom_call.1} parent=5 // pred_check_branch
        %395 = sbr.rel (%p393) target = $region36
      $region35: #{tpu_custom_call.1} parent=5 // pred_region
        %s396 = ssub.s32 %s13, 2
        // Predicated region
        $region37: #{tpu_custom_call.1} parent=35 // pred_check
          %p397 = pneg %p68
        $region38: #{tpu_custom_call.1} parent=35 // pred_check_branch
          %399 = sbr.rel (%p397) target = $region40
        $region39: #{tpu_custom_call.1} parent=35 // pred_region
          %s400 = sand.u32 %s53, 1
          %s401 = scalar_lea.sflag [#allocation4], %s400
          %s402 = sand.u32 %s53, 1
          %s403 = scalar_lea.vmem [#allocation5], %s402
          %404 = dma.done %s401, 16
        $region40: #{tpu_custom_call.1} parent=35 // pred_fallthru
          _
      $region36: #{tpu_custom_call.1} parent=5 // pred_fallthru
        _
    $region6: #{tpu_custom_call.1} parent=1 // loop_footer
      %s17 = sadd.s32 1, %s13
    $region7: #{tpu_custom_call.1} parent=1 // loop_footer_branch
      %12 = sbr.rel target = $region3
    $region8: #{tpu_custom_call.1} parent=1 // loop_exit
      _
    %405 = vsyncpa [#allocation3], 1
    %s406 = scalar_lea.sflag [#allocation3], 1
    %407 = vsyncpa %s406, 1
    %408 = vsyncpa [#allocation4], 1
    %s409 = scalar_lea.sflag [#allocation4], 1
    %410 = vsyncpa %s409, 1

</llo_original>
